<compile_context>
chip_gen: v5e
topology: v5e:2x2
jax: 0.10.0
libtpu: 0.0.40
codegen_flags: <defaults>
</compile_context>

<pallas_src>
import functools
import math

import jax
import jax.numpy as jnp
from jax import lax
from jax.experimental import pallas as pl
from jax.experimental.pallas import tpu as pltpu


def _silu(x):
    return x * jax.nn.sigmoid(x)


_ACT2FN = {
    "silu": _silu,
    "gelu": jax.nn.gelu,
    "relu": lambda x: jnp.maximum(x, 0.0),
}
# TODO(synk): remaining HF ACT2FN variants (gelu_new, quick_gelu, ...) can be added if needed.


def _shared_encoder_kernel(x_ref, w1_ref, w2_ref, o_ref, acc_ref, *,
                           act_fn, compute_dtype):
    j = pl.program_id(1)  # ffn-chunk axis (accumulation axis, last in grid)

    @pl.when(j == 0)
    def _():
        acc_ref[...] = jnp.zeros_like(acc_ref)

    x = x_ref[...]
    w1 = w1_ref[...]
    w2 = w2_ref[...]
    if compute_dtype is not None:
        # bf16 MXU path for f32 activations: full-rate MXU, f32 accumulation.
        x = x.astype(compute_dtype)
        w1 = w1.astype(compute_dtype)
        w2 = w2.astype(compute_dtype)

    # First projection chunk: (bm, H) x (bf, H) contracting on H -> (bm, bf).
    # Weights stay in PyTorch layout; contraction dims express the transpose.
    h = lax.dot_general(x, w1, (((1,), (1,)), ((), ())),
                        preferred_element_type=jnp.float32)
    # Activation in f32 (EUP), then a single cast for the second MXU pass.
    h = act_fn(h).astype(w2.dtype)
    # Second projection chunk: (bm, bf) x (H, bf) contracting on bf -> (bm, H).
    acc_ref[...] += lax.dot_general(h, w2, (((1,), (1,)), ((), ())),
                                    preferred_element_type=jnp.float32)

    @pl.when(j == pl.num_programs(1) - 1)
    def _():
        o_ref[...] = acc_ref[...].astype(o_ref.dtype)


def _pick_ffn_tile(ffn, block_ffn):
    """Largest divisor of ffn that is a multiple of 256 (then 128) and <= block_ffn.

    bf must be a multiple of 128 (lane constraint of the (hidden, bf) w2 block)
    or equal to the full ffn dim.
    """
    if ffn <= block_ffn or ffn % 128 != 0:
        # Small / oddly-shaped ffn: take the whole thing (toy shapes only).
        return ffn
    for align in (256, 128):
        best = 0
        cand = align
        limit = min(block_ffn, ffn)
        while cand <= limit:
            if ffn % cand == 0:
                best = cand
            cand += align
        if best:
            return best
    return ffn


def _estimate_vmem_bytes(bm, bf, hidden, itemsize):
    """Double-buffered I/O tiles + f32 accumulator + f32 intermediates."""
    return (2 * bm * hidden * itemsize       # x tile (revisited across j, 2 buffers)
            + 2 * bf * hidden * itemsize     # w1 chunk, 2-deep
            + 2 * hidden * bf * itemsize     # w2 chunk, 2-deep
            + 2 * bm * hidden * itemsize     # output tile, 2-deep
            + bm * hidden * 4                # f32 accumulator scratch
            + 2 * bm * bf * 4)               # f32 intermediates / compiler scratch


def _vmem_capacity_bytes():
    try:
        info = pltpu.get_tpu_info()
        cap = getattr(info, "vmem_capacity_bytes", None)
        if cap:
            return int(cap)
    except Exception:
        pass
    return 64 * 1024 * 1024  # conservative default (v7x-sized)


def mixtral_shared_encoder(hidden_states, w1, w2, *, hidden_act="silu",
                           block_rows=None, block_ffn=512,
                           allow_bf16_compute=False):
    """Fused w2(act(w1(x))).

    Weights are in PyTorch nn.Linear layout: w1: (ffn, hidden), w2: (hidden, ffn).
    `allow_bf16_compute=True` runs the MXU passes in bf16 (f32 accumulation)
    when the activations are float32 -- much faster, small accuracy cost.
    """
    orig_shape = hidden_states.shape
    hidden = orig_shape[-1]
    ffn = w1.shape[0]
    assert w1.shape == (ffn, hidden), f"w1 shape {w1.shape} != ({ffn}, {hidden})"
    assert w2.shape == (hidden, ffn), f"w2 shape {w2.shape} != ({hidden}, {ffn})"

    x2d = hidden_states.reshape(-1, hidden)
    rows = x2d.shape[0]

    dtype = hidden_states.dtype
    itemsize = jnp.dtype(dtype).itemsize
    sublane = {4: 8, 2: 16, 1: 32}.get(itemsize, 8)

    compute_dtype = None
    if allow_bf16_compute and dtype == jnp.float32:
        compute_dtype = jnp.bfloat16

    # ---- ffn tile: accumulation axis, must evenly divide ffn, MXU-aligned. ----
    bf = _pick_ffn_tile(ffn, block_ffn)

    # ---- row tile: as large as VMEM allows (generation-aware). ----
    vmem_cap = _vmem_capacity_bytes()
    vmem_budget = int(vmem_cap * 0.85)  # headroom for compiler-internal scratch
    if block_rows is None:
        block_rows = 64
        for cand in (1024, 512, 256, 128, 64):
            if int(_estimate_vmem_bytes(cand, bf, hidden, itemsize) * 1.25) <= vmem_budget:
                block_rows = cand
                break

    # Guarantee >=2 row blocks where possible so the "parallel" row axis can
    # shard across v7x's two TensorCores (no effect on 1-TC chips).
    two_blocks = -(-rows // 2)
    two_blocks = max(sublane, ((two_blocks + sublane - 1) // sublane) * sublane)
    bm = min(block_rows, two_blocks)
    bm = max(sublane, (bm // sublane) * sublane)
    if bm >= rows:
        bm = rows  # full-dim row block (always a legal block shape)

    grid = (pl.cdiv(rows, bm), ffn // bf)

    est = _estimate_vmem_bytes(bm, bf, hidden, itemsize)
    vmem_limit = int(min(max(int(est * 1.25), 32 * 1024 * 1024), vmem_cap))

    # TODO(synk): optional pl.Buffered(3) on the weight specs (v5e) and an fp8
    # weight-stream path (v7x) are further memory-bound-regime wins.

    out = pl.pallas_call(
        functools.partial(_shared_encoder_kernel,
                          act_fn=_ACT2FN[hidden_act],
                          compute_dtype=compute_dtype),
        out_shape=jax.ShapeDtypeStruct((rows, hidden), dtype),
        grid_spec=pltpu.PrefetchScalarGridSpec(
            num_scalar_prefetch=0,
            grid=grid,
            in_specs=[
                pl.BlockSpec((bm, hidden), lambda i, j: (i, 0)),   # x rows
                pl.BlockSpec((bf, hidden), lambda i, j: (j, 0)),   # w1 chunk (ffn, hidden)
                pl.BlockSpec((hidden, bf), lambda i, j: (0, j)),   # w2 chunk (hidden, ffn)
            ],
            out_specs=pl.BlockSpec((bm, hidden), lambda i, j: (i, 0)),
            scratch_shapes=[pltpu.VMEM((bm, hidden), jnp.float32)],
        ),
        compiler_params=pltpu.CompilerParams(
            dimension_semantics=("parallel", "arbitrary"),
            vmem_limit_bytes=vmem_limit,
        ),
    )(x2d, w1, w2)

    return out.reshape(orig_shape)


def mixtral_shared_encoder_ref(hidden_states, w1, w2, hidden_act="silu"):
    """Pure-JAX reference mirroring the PyTorch module."""
    h = hidden_states @ w1.T
    h = _ACT2FN[hidden_act](h)
    return (h @ w2.T).astype(hidden_states.dtype)


if __name__ == "__main__":
    # Small shapes consistent with the module: batch=2, seq=8, hidden=32, ffn=64.
    batch, seq, hidden, ffn = 2, 8, 32, 64

    key = jax.random.PRNGKey(0)
    kx, k1, k2 = jax.random.split(key, 3)
    x = jax.random.normal(kx, (batch, seq, hidden), dtype=jnp.float32)
    # nn.Linear-scale init (~1/sqrt(fan_in)) in PyTorch layout, bias-free.
    w1 = jax.random.normal(k1, (ffn, hidden), dtype=jnp.float32) / math.sqrt(hidden)
    w2 = jax.random.normal(k2, (hidden, ffn), dtype=jnp.float32) / math.sqrt(ffn)

    ref = mixtral_shared_encoder_ref(x, w1, w2, hidden_act="silu")

    # Full-precision path.
    out = mixtral_shared_encoder(x, w1, w2, hidden_act="silu")
    out = jax.block_until_ready(out)
    assert out.shape == x.shape and out.dtype == x.dtype
    assert jnp.allclose(out, ref, atol=1e-4, rtol=1e-4), "mismatch vs reference (f32 path)"

    # bf16-compute path (f32 I/O, bf16 MXU operands, f32 accumulation).
    out_bf16 = mixtral_shared_encoder(x, w1, w2, hidden_act="silu",
                                      allow_bf16_compute=True)
    out_bf16 = jax.block_until_ready(out_bf16)
    assert jnp.allclose(out_bf16, ref, atol=1e-1, rtol=1e-1), "mismatch vs reference (bf16 path)"

    print("KERNEL_OK")
</pallas_src>

<mosaic_0001>
module attributes {stable_mosaic.version = 11 : i64} {
  func.func @_shared_encoder_kernel(%arg0: i32, %arg1: i32, %arg2: memref<8x32xf32, #tpu.memory_space<vmem>>, %arg3: memref<64x32xf32, #tpu.memory_space<vmem>>, %arg4: memref<32x64xf32, #tpu.memory_space<vmem>>, %arg5: memref<8x32xf32, #tpu.memory_space<vmem>>, %arg6: memref<8x32xf32, #tpu.memory_space<vmem>>) attributes {dimension_semantics = [#tpu.dimension_semantics<parallel>, #tpu.dimension_semantics<arbitrary>], iteration_bounds = array<i64: 2, 1>, scalar_prefetch = 0 : i64, scratch_operands = 1 : i64, tpu.core_type = #tpu.core_type<tc>, window_params = [{transform_indices = @transform_0, window_bounds = array<i64: 8, 32>}, {transform_indices = @transform_1, window_bounds = array<i64: 64, 32>}, {transform_indices = @transform_2, window_bounds = array<i64: 32, 64>}, {transform_indices = @transform_3, window_bounds = array<i64: 8, 32>}]} {
    %c0_i32 = arith.constant 0 : i32
    %0 = arith.cmpi eq, %arg1, %c0_i32 : i32
    %1 = arith.extui %0 : i1 to i32
    %c0_i32_0 = arith.constant 0 : i32
    %2 = arith.cmpi ne, %1, %c0_i32_0 : i32
    scf.if %2 {
      %cst_14 = arith.constant 0.000000e+00 : f32
      %20 = vector.broadcast %cst_14 : f32 to vector<8x32xf32>
      %c0_15 = arith.constant 0 : index
      %c0_16 = arith.constant 0 : index
      %21 = vector.load %arg6[%c0_15, %c0_16] : memref<8x32xf32, #tpu.memory_space<vmem>>, vector<8x32xf32>
      tpu.vector_store %arg6[%c0_15, %c0_16], %20 {strides = array<i32>} : memref<8x32xf32, #tpu.memory_space<vmem>>, vector<8x32xf32>,
    } else {
    }
    %c0 = arith.constant 0 : index
    %c0_1 = arith.constant 0 : index
    %3 = vector.load %arg2[%c0, %c0_1] : memref<8x32xf32, #tpu.memory_space<vmem>>, vector<8x32xf32>
    %c0_2 = arith.constant 0 : index
    %c0_3 = arith.constant 0 : index
    %4 = vector.load %arg3[%c0_2, %c0_3] : memref<64x32xf32, #tpu.memory_space<vmem>>, vector<64x32xf32>
    %c0_4 = arith.constant 0 : index
    %c0_5 = arith.constant 0 : index
    %5 = vector.load %arg4[%c0_4, %c0_5] : memref<32x64xf32, #tpu.memory_space<vmem>>, vector<32x64xf32>
    %cst = arith.constant dense<0.000000e+00> : vector<8x64xf32>
    %6 = tpu.matmul %3, %4, %cst {dimension_numbers = #tpu.dot_dimension_numbers<[1], [1], [0], [0], [0, 0, 1, 0], [], []>} : vector<8x32xf32>, vector<64x32xf32>, vector<8x64xf32> -> vector<8x64xf32>
    %7 = arith.negf %6 : vector<8x64xf32>
    %8 = math.exp %7 : vector<8x64xf32>
    %cst_6 = arith.constant 1.000000e+00 : f32
    %9 = vector.broadcast %cst_6 : f32 to vector<8x64xf32>
    %10 = arith.addf %9, %8 : vector<8x64xf32>
    %11 = arith.divf %9, %10 : vector<8x64xf32>
    %12 = arith.mulf %6, %11 : vector<8x64xf32>
    %c0_7 = arith.constant 0 : index
    %c0_8 = arith.constant 0 : index
    %13 = vector.load %arg6[%c0_7, %c0_8] : memref<8x32xf32, #tpu.memory_space<vmem>>, vector<8x32xf32>
    %cst_9 = arith.constant dense<0.000000e+00> : vector<8x32xf32>
    %14 = tpu.matmul %12, %5, %cst_9 {dimension_numbers = #tpu.dot_dimension_numbers<[1], [1], [0], [0], [0, 0, 1, 0], [], []>} : vector<8x64xf32>, vector<32x64xf32>, vector<8x32xf32> -> vector<8x32xf32>
    %15 = arith.addf %13, %14 : vector<8x32xf32>
    %c0_10 = arith.constant 0 : index
    %c0_11 = arith.constant 0 : index
    %16 = vector.load %arg6[%c0_10, %c0_11] : memref<8x32xf32, #tpu.memory_space<vmem>>, vector<8x32xf32>
    tpu.vector_store %arg6[%c0_10, %c0_11], %15 {strides = array<i32>} : memref<8x32xf32, #tpu.memory_space<vmem>>, vector<8x32xf32>,
    %c0_i32_12 = arith.constant 0 : i32
    %17 = arith.cmpi eq, %arg1, %c0_i32_12 : i32
    %18 = arith.extui %17 : i1 to i32
    %c0_i32_13 = arith.constant 0 : i32
    %19 = arith.cmpi ne, %18, %c0_i32_13 : i32
    scf.if %19 {
      %c0_14 = arith.constant 0 : index
      %c0_15 = arith.constant 0 : index
      %20 = vector.load %arg6[%c0_14, %c0_15] : memref<8x32xf32, #tpu.memory_space<vmem>>, vector<8x32xf32>
      %c0_16 = arith.constant 0 : index
      %c0_17 = arith.constant 0 : index
      %21 = vector.load %arg5[%c0_16, %c0_17] : memref<8x32xf32, #tpu.memory_space<vmem>>, vector<8x32xf32>
      tpu.vector_store %arg5[%c0_16, %c0_17], %20 {strides = array<i32>} : memref<8x32xf32, #tpu.memory_space<vmem>>, vector<8x32xf32>,
    } else {
    }
    return
  }
  func.func @transform_0(%arg0: i32, %arg1: i32) -> (i32, i32) {
    %c0_i32 = arith.constant 0 : i32
    %c0_i32_0 = arith.constant 0 : i32
    return %arg0, %c0_i32 : i32, i32
  }
  func.func @transform_1(%arg0: i32, %arg1: i32) -> (i32, i32) {
    %c0_i32 = arith.constant 0 : i32
    %c0_i32_0 = arith.constant 0 : i32
    return %arg1, %c0_i32 : i32, i32
  }
  func.func @transform_2(%arg0: i32, %arg1: i32) -> (i32, i32) {
    %c0_i32 = arith.constant 0 : i32
    %c0_i32_0 = arith.constant 0 : i32
    return %c0_i32, %arg1 : i32, i32
  }
  func.func @transform_3(%arg0: i32, %arg1: i32) -> (i32, i32) {
    %c0_i32 = arith.constant 0 : i32
    %c0_i32_0 = arith.constant 0 : i32
    return %arg0, %c0_i32 : i32, i32
  }
}

</mosaic_0001>

<llo_original>
// kernel: tpu_custom_call.1
$region0: #{tpu_custom_call.1}
  #allocation0 [shape = 'u32[]', space=smem, size = 0x4, offset = 0x4, fixed_abs, tag = 'smem constant byte address 0x4 - core index']
  #allocation1 [shape = 'u32[72,128]{1,0:T(1,128)}', space=vmem, size = 0x9000, scoped, tag = 'internal scratch']
  #allocation2 [shape = 'f32[8,32]{1,0:T(8,128)}', space=vmem, size = 0x1000, scoped, tag = 'scratch operand']
  %s0 = inlined_call_operand.vmem [shape: f32[16,32], index: 0, kind: input, shape index: {}]
  %s1 = inlined_call_operand.vmem [shape: f32[64,32], index: 1, kind: input, shape index: {}]
  %s2 = inlined_call_operand.vmem [shape: f32[32,64], index: 2, kind: input, shape index: {}]
  %s3 = inlined_call_operand.hbm [shape: f32[16,32], index: 3, kind: output, shape index: {}]
  %s4 = sld [smem:[#allocation0]]
  $region53: #{tpu_custom_call.1} parent=0
    _
  %s6 = ssub.s32 1, %s4
  %s7 = scalar_select 0, %s6, %s4
  $region1: #{tpu_custom_call.1} parent=0
    #allocation3 [shape = 'u8[8192]{0}', space=vmem, size = 0x2000, scoped, tag = 'output window, operand 0']
    #allocation4 [shape = 's32[2]{0}', space=sflag, size = 0x8, scoped, tag = 'scoped memory for tpu_custom_call.1']
    %8 = vsyncpa [#allocation4], 0
    %s9 = scalar_lea.sflag [#allocation4], 1
    %10 = vsyncpa %s9, 0
    loop: start=0, step=1, limit=4
    $region2: #{tpu_custom_call.1} parent=1 // loop_pre_header
      _
    $region3: #{tpu_custom_call.1} parent=1 // loop_header
      %s12 = sphi 0, %s16
      %p13 = scmp.ge.s32.totalorder %s12, 4
      %s19 = sphi 0, %s31
      %s20 = sphi 0, %s27
      %s21 = sphi 0, %s19
      %s22 = sphi 0, %s20
      %s23 = sphi 0, %s21
      %s24 = sphi 0, %s22
      %s34 = sphi 0, %s36
      %s37 = sphi 0, %s34
      %s38 = sphi 0, %s37
      %s54 = sphi 0, %s38
      %s60 = sphi 0, %s62
      %s63 = sphi 0, %s60
      %s64 = sphi 0, %s63
      %s80 = sphi 0, %s64
      %s86 = sphi 0, %s88
      %s89 = sphi 0, %s86
      %s90 = sphi 0, %s89
      %s106 = sphi 0, %s90
      %s112 = sphi 0, %s114
      %s115 = sphi 0, %s112
      %s116 = sphi 0, %s115
      %s132 = sphi 0, %s116
    $region4: #{tpu_custom_call.1} parent=1 // loop_header_branch
      %15 = sbr.rel (%p13) target = $region8
    $region5: #{tpu_custom_call.1} parent=1 // loop_body
      %s17 = ssub.s32 %s12, 1
      %s18 = ssub.s32 %s12, 2
      %s25 = sadd.s32 1, %s20
      %p26 = scmp.ge.s32.totalorder %s25, 1
      %s27 = scalar_select %p26, 0, %s25
      %s28 = sadd.s32 1, %s19
      %s29 = scalar_select %p26, %s28, %s19
      %p30 = scmp.ge.s32.totalorder %s29, 2
      %s31 = scalar_select %p30, 0, %s29
      %s32 = ssub.s32 %s19, %s31
      %p33 = scmp.eq.s32.totalorder %s32, 0
      %s35 = sadd.s32 %s34, 1
      %s36 = scalar_select %p33, %s34, %s35
      %p39 = pneg %p33
      %p40 = scmp.eq.s32.totalorder %s12, 1
      %p41 = por %p39, %p40
      %p42 = scmp.ne.s32.totalorder %s34, %s37
      %p43 = scmp.eq.s32.totalorder %s12, 0
      %p44 = por %p42, %p43
      %p45 = scmp.ne.s32.totalorder %s34, %s37
      %p46 = scmp.eq.s32.totalorder %s17, 1
      %p47 = por %p45, %p46
      %p48 = scmp.ne.s32.totalorder %s37, %s38
      %p49 = scmp.eq.s32.totalorder %s17, 0
      %p50 = por %p48, %p49
      %p51 = scmp.ne.s32.totalorder %s37, %s38
      %p52 = scmp.eq.s32.totalorder %s18, 1
      %p53 = por %p51, %p52
      %p55 = scmp.ne.s32.totalorder %s38, %s54
      %p56 = scmp.eq.s32.totalorder %s18, 0
      %p57 = por %p55, %p56
      %s58 = ssub.s32 %s20, %s27
      %p59 = scmp.eq.s32.totalorder %s58, 0
      %s61 = sadd.s32 %s60, 1
      %s62 = scalar_select %p59, %s60, %s61
      %p65 = pneg %p59
      %p66 = scmp.eq.s32.totalorder %s12, 1
      %p67 = por %p65, %p66
      %p68 = scmp.ne.s32.totalorder %s60, %s63
      %p69 = scmp.eq.s32.totalorder %s12, 0
      %p70 = por %p68, %p69
      %p71 = scmp.ne.s32.totalorder %s60, %s63
      %p72 = scmp.eq.s32.totalorder %s17, 1
      %p73 = por %p71, %p72
      %p74 = scmp.ne.s32.totalorder %s63, %s64
      %p75 = scmp.eq.s32.totalorder %s17, 0
      %p76 = por %p74, %p75
      %p77 = scmp.ne.s32.totalorder %s63, %s64
      %p78 = scmp.eq.s32.totalorder %s18, 1
      %p79 = por %p77, %p78
      %p81 = scmp.ne.s32.totalorder %s64, %s80
      %p82 = scmp.eq.s32.totalorder %s18, 0
      %p83 = por %p81, %p82
      %s84 = ssub.s32 %s20, %s27
      %p85 = scmp.eq.s32.totalorder %s84, 0
      %s87 = sadd.s32 %s86, 1
      %s88 = scalar_select %p85, %s86, %s87
      %p91 = pneg %p85
      %p92 = scmp.eq.s32.totalorder %s12, 1
      %p93 = por %p91, %p92
      %p94 = scmp.ne.s32.totalorder %s86, %s89
      %p95 = scmp.eq.s32.totalorder %s12, 0
      %p96 = por %p94, %p95
      %p97 = scmp.ne.s32.totalorder %s86, %s89
      %p98 = scmp.eq.s32.totalorder %s17, 1
      %p99 = por %p97, %p98
      %p100 = scmp.ne.s32.totalorder %s89, %s90
      %p101 = scmp.eq.s32.totalorder %s17, 0
      %p102 = por %p100, %p101
      %p103 = scmp.ne.s32.totalorder %s89, %s90
      %p104 = scmp.eq.s32.totalorder %s18, 1
      %p105 = por %p103, %p104
      %p107 = scmp.ne.s32.totalorder %s90, %s106
      %p108 = scmp.eq.s32.totalorder %s18, 0
      %p109 = por %p107, %p108
      %s110 = ssub.s32 %s19, %s31
      %p111 = scmp.eq.s32.totalorder %s110, 0
      %s113 = sadd.s32 %s112, 1
      %s114 = scalar_select %p111, %s112, %s113
      %p117 = pneg %p111
      %p118 = scmp.eq.s32.totalorder %s12, 1
      %p119 = por %p117, %p118
      %p120 = scmp.ne.s32.totalorder %s112, %s115
      %p121 = scmp.eq.s32.totalorder %s12, 0
      %p122 = por %p120, %p121
      %p123 = scmp.ne.s32.totalorder %s112, %s115
      %p124 = scmp.eq.s32.totalorder %s17, 1
      %p125 = por %p123, %p124
      %p126 = scmp.ne.s32.totalorder %s115, %s116
      %p127 = scmp.eq.s32.totalorder %s17, 0
      %p128 = por %p126, %p127
      %p129 = scmp.ne.s32.totalorder %s115, %s116
      %p130 = scmp.eq.s32.totalorder %s18, 1
      %p131 = por %p129, %p130
      %p133 = scmp.ne.s32.totalorder %s116, %s132
      %p134 = scmp.eq.s32.totalorder %s18, 0
      %p135 = por %p133, %p134
      %p136 = scmp.le.s32.totalorder 1, %s12
      %p137 = scmp.lt.s32.totalorder %s12, 3
      %p138 = pnand %p136, %p137
      %p139 = pneg %p138
      // Predicated region
      $region9: #{tpu_custom_call.1} parent=5 // pred_check
        _
      $region10: #{tpu_custom_call.1} parent=5 // pred_check_branch
        %141 = sbr.rel (%p138) target = $region12
      $region11: #{tpu_custom_call.1} parent=5 // pred_region
        %s142 = ssub.s32 %s12, 1
        // Predicated region
        $region13: #{tpu_custom_call.1} parent=11 // pred_check
          %p143 = pneg %p76
        $region14: #{tpu_custom_call.1} parent=11 // pred_check_branch
          %145 = sbr.rel (%p143) target = $region16
        $region15: #{tpu_custom_call.1} parent=11 // pred_region
          %s146 = smul.u32 8, %s22
          %p147 = scmp.lt.s32.totalorder %s146, 7
          %s148 = scalar_select %p147, %s146, 7
          %s149 = smul.addr %s148, 8
          %s150 = scalar_lea.vmem %s1, %s149
          %s151 = smul.u32 8, %s22
        $region16: #{tpu_custom_call.1} parent=11 // pred_fallthru
          _
        // Predicated region
        $region17: #{tpu_custom_call.1} parent=11 // pred_check
          %p152 = pneg %p102
        $region18: #{tpu_custom_call.1} parent=11 // pred_check_branch
          %154 = sbr.rel (%p152) target = $region20
        $region19: #{tpu_custom_call.1} parent=11 // pred_region
          %p155 = scmp.lt.s32.totalorder %s22, 0
          %s156 = scalar_select %p155, %s22, 0
          %s157 = smul.addr %s156, 8
          %s158 = scalar_lea.vmem %s2, %s157
        $region20: #{tpu_custom_call.1} parent=11 // pred_fallthru
          _
      $region12: #{tpu_custom_call.1} parent=5 // pred_fallthru
        _
      %p159 = scmp.lt.s32.totalorder %s12, 2
      // Predicated region
      $region21: #{tpu_custom_call.1} parent=5 // pred_check
        %p160 = pneg %p159
      $region22: #{tpu_custom_call.1} parent=5 // pred_check_branch
        %162 = sbr.rel (%p160) target = $region24
      $region23: #{tpu_custom_call.1} parent=5 // pred_region
        // Predicated region
        $region25: #{tpu_custom_call.1} parent=23 // pred_check
          %p163 = pneg %p44
        $region26: #{tpu_custom_call.1} parent=23 // pred_check_branch
          %165 = sbr.rel (%p163) target = $region28
        $region27: #{tpu_custom_call.1} parent=23 // pred_region
          %p166 = scmp.lt.s32.totalorder %s19, 1
          %s167 = scalar_select %p166, %s19, 1
          %s168 = smul.addr %s167, 8
          %s169 = scalar_lea.vmem %s0, %s168
        $region28: #{tpu_custom_call.1} parent=23 // pred_fallthru
          _
      $region24: #{tpu_custom_call.1} parent=5 // pred_fallthru
        _
      %p170 = scmp.le.s32.totalorder 1, %s12
      %p171 = scmp.lt.s32.totalorder %s12, 3
      %p172 = pnand %p170, %p171
      %p173 = pneg %p172
      // Predicated region
      $region29: #{tpu_custom_call.1} parent=5 // pred_check
        _
      $region30: #{tpu_custom_call.1} parent=5 // pred_check_branch
        %175 = sbr.rel (%p172) target = $region32
      $region31: #{tpu_custom_call.1} parent=5 // pred_region
        %s176 = ssub.s32 %s12, 1
        %p177 = scmp.lt.s32.totalorder %s21, 1
        %s178 = scalar_select %p177, %s21, 1
        %s179 = smul.addr %s178, 8
        %s180 = scalar_lea.vmem %s0, %s179
        %p181 = pneg %p50
        %p182 = pneg %p47
        %s183 = smul.u32 8, %s22
        %p184 = scmp.lt.s32.totalorder %s183, 7
        %s185 = scalar_select %p184, %s183, 7
        %s186 = smul.addr %s185, 8
        %s187 = scalar_lea.vmem %s1, %s186
        %p188 = pneg %p76
        %p189 = pneg %p73
        %p190 = scmp.lt.s32.totalorder %s22, 0
        %s191 = scalar_select %p190, %s22, 0
        %s192 = smul.addr %s191, 8
        %s193 = scalar_lea.vmem %s2, %s192
        %p194 = pneg %p102
        %p195 = pneg %p99
        %p196 = pneg %p128
        %p197 = pneg %p125
        %s198 = sand.u32 %s115, 1
        %s199 = scalar_lea.sflag [#allocation4], %s198
        %s200 = sand.u32 %s115, 1
        %s201 = smul.addr %s200, 8
        %s202 = scalar_lea.vmem [#allocation3], %s201
        %p203 = scmp.lt.s32.totalorder %s21, 1
        %s204 = scalar_select %p203, %s21, 1
        %s205 = smul.addr %s204, 8
        %s206 = scalar_lea.vmem %s0, %s205
        %s207 = smul.u32 8, %s22
        %p208 = scmp.lt.s32.totalorder %s207, 7
        %s209 = scalar_select %p208, %s207, 7
        %s210 = smul.addr %s209, 8
        %s211 = scalar_lea.vmem %s1, %s210
        %s212 = smul.u32 8, %s22
        %p213 = scmp.lt.s32.totalorder %s22, 0
        %s214 = scalar_select %p213, %s22, 0
        %s215 = smul.addr %s214, 8
        %s216 = scalar_lea.vmem %s2, %s215
        %p217 = scmp.eq.s32.totalorder %s22, 0
        // Predicated region
        $region33: #{tpu_custom_call.1} parent=31 // pred_check
          %p218 = pneg %p217
        $region34: #{tpu_custom_call.1} parent=31 // pred_check_branch
          %220 = sbr.rel (%p218) target = $region36
        $region35: #{tpu_custom_call.1} parent=31 // pred_region
          %vm221 = vcmask 261120
          %222 = vst.msk [vmem:[#allocation2] sm:$0xff] %vm221, 0.0
        $region36: #{tpu_custom_call.1} parent=31 // pred_fallthru
          _
        %v223 = vld [vmem:[%s206] sm:$0xff]
        %v224 = vld [vmem:[%s211] sm:$0xff]
        %v225 = vld [vmem:[%s211 + $0x8] sm:$0xff]
        %v226 = vld [vmem:[%s211 + $0x10] sm:$0xff]
        %v227 = vld [vmem:[%s211 + $0x18] sm:$0xff]
        %v228 = vld [vmem:[%s211 + $0x20] sm:$0xff]
        %v229 = vld [vmem:[%s211 + $0x28] sm:$0xff]
        %v230 = vld [vmem:[%s211 + $0x30] sm:$0xff]
        %v231 = vld [vmem:[%s211 + $0x38] sm:$0xff]
        %v232 = vld [vmem:[%s216] sm:$0xff]
        %v233 = vld [vmem:[%s216 + $0x8] sm:$0xff]
        %v234 = vld [vmem:[%s216 + $0x10] sm:$0xff]
        %v235 = vld [vmem:[%s216 + $0x18] sm:$0xff]
        %vm236 = vcmask 261120
        %v238 = vsel %vm236, %v223, 0
        %v241 = vsel %vm236, %v224, 0
        %v244 = vsel %vm236, %v225, 0
        %v247 = vsel %vm236, %v226, 0
        %v250 = vsel %vm236, %v227, 0
        %v253 = vsel %vm236, %v228, 0
        %v256 = vsel %vm236, %v229, 0
        %v259 = vsel %vm236, %v230, 0
        %v262 = vsel %vm236, %v231, 0
        %264 = vmatpush.xpose.msra.mxu0 0.0
        %265 = vmatpush.xpose.msra.mxu0 0.0
        %266 = vmatpush.xpose.msra.mxu0 0.0
        %267 = vmatpush.xpose.msra.mxu0 0.0
        %268 = vmatpush.xpose.msra.mxu0 0.0
        %269 = vmatpush.xpose.msra.mxu0 0.0
        %270 = vmatpush.xpose.msra.mxu0 0.0
        %271 = vmatpush.xpose.msra.mxu0 0.0
        %272 = vmatpush.xpose.msra.mxu0 %v262
        %273 = vmatpush.xpose.msra.mxu0 %v259
        %274 = vmatpush.xpose.msra.mxu0 %v256
        %275 = vmatpush.xpose.msra.mxu0 %v253
        %276 = vmatpush.xpose.msra.mxu0 %v250
        %277 = vmatpush.xpose.msra.mxu0 %v247
        %278 = vmatpush.xpose.msra.mxu0 %v244
        %279 = vmatpush.xpose.msra.mxu0 %v241
        %280 = vmatmul.f32.gmra.mxu0 %v238
        %v281 = vpop.f32.mrf.mxu0
        %v282 = vadd.f32 0.0, %v281
        %283 = vdwg.mxu0
        %v284 = vxor.u32 %v282, 2147483648
        %v285 = vmul.f32 %v284, 1.442695
        %v286 = vpow.pop %v285
        %v287 = vadd.f32 %v286, 1.0
        %v288 = vrcp.pop %v287
        %v289 = vmul.f32 %v287, %v288
        %v290 = vsub.f32 1.0, %v289
        %v291 = vmul.f32 %v288, %v290
        %v292 = vadd.f32 %v288, %v291
        %vm293 = vweird.f32 %v287
        %vm294 = vweird.f32 %v288
        %vm295 = vmor %vm293, %vm294
        %v296 = vsel %vm295, %v288, %v292
        %v297 = vand.u32 2147483647, %v287
        %vm298 = vcmp.eq.f32.partialorder %v297, 8.507059e+37
        %v299 = vand.u32 %v287, 2147483648
        %v300 = vor.u32 1.1754944e-38, %v299
        %v301 = vsel %vm298, %v300, %v296
        %v302 = vmul.f32 1.0, %v301
        %v303 = vmul.f32 %v282, %v302
        %v304 = vld [vmem:[#allocation2] sm:$0xff]
        %vm305 = vcmask 523264
        %v307 = vsel %vm305, %v303, 0
        %v310 = vsel %vm305, %v232, 0
        %v313 = vsel %vm305, %v233, 0
        %v316 = vsel %vm305, %v234, 0
        %v319 = vsel %vm305, %v235, 0
        %321 = vmatpush.xpose.msra.mxu0 0.0
        %322 = vmatpush.xpose.msra.mxu0 0.0
        %323 = vmatpush.xpose.msra.mxu0 0.0
        %324 = vmatpush.xpose.msra.mxu0 0.0
        %325 = vmatpush.xpose.msra.mxu0 0.0
        %326 = vmatpush.xpose.msra.mxu0 0.0
        %327 = vmatpush.xpose.msra.mxu0 0.0
        %328 = vmatpush.xpose.msra.mxu0 0.0
        %329 = vmatpush.xpose.msra.mxu0 0.0
        %330 = vmatpush.xpose.msra.mxu0 0.0
        %331 = vmatpush.xpose.msra.mxu0 0.0
        %332 = vmatpush.xpose.msra.mxu0 0.0
        %333 = vmatpush.xpose.msra.mxu0 %v319
        %334 = vmatpush.xpose.msra.mxu0 %v316
        %335 = vmatpush.xpose.msra.mxu0 %v313
        %336 = vmatpush.xpose.msra.mxu0 %v310
        %337 = vmatmul.f32.gmra.mxu0 %v307
        %v338 = vpop.f32.mrf.mxu0
        %v339 = vadd.f32 0.0, %v338
        %340 = vdwg.mxu0
        %v341 = vadd.f32 %v304, %v339
        %342 = vst.msk [vmem:[#allocation2] sm:$0xff] %vm236, %v341
        // Predicated region
        $region37: #{tpu_custom_call.1} parent=31 // pred_check
          %p343 = pneg %p217
        $region38: #{tpu_custom_call.1} parent=31 // pred_check_branch
          %345 = sbr.rel (%p343) target = $region40
        $region39: #{tpu_custom_call.1} parent=31 // pred_region
          %v346 = vld [vmem:[#allocation2] sm:$0xff]
          %347 = vst.msk [vmem:[%s202] sm:$0xff] %vm236, %v346
        $region40: #{tpu_custom_call.1} parent=31 // pred_fallthru
          _
        %s348 = sand.u32 %s115, 1
        %s349 = scalar_lea.sflag [#allocation4], %s348
        %s350 = sand.u32 %s115, 1
        %s351 = smul.addr %s350, 8
        %s352 = scalar_lea.vmem [#allocation3], %s351
        // Predicated region
        $region41: #{tpu_custom_call.1} parent=31 // pred_check
          %p353 = pneg %p125
        $region42: #{tpu_custom_call.1} parent=31 // pred_check_branch
          %355 = sbr.rel (%p353) target = $region44
        $region43: #{tpu_custom_call.1} parent=31 // pred_region
          %357 = vsyncadd %s349, 0
          %s358 = smul.addr %s21, 8
          %s359 = scalar_lea.hbm %s3, %s358
          %s361 = sshll.u32 %s352, 4
          %s362 = int_to_ptr.vmem [resolvable:$true] %s361
          %s363 = sshll.u32 %s359, 4
          %s364 = int_to_ptr.hbm [resolvable:$true] %s363
          %366 = dma.vmem_to_hbm [thread:$0]  %s362, 128, %s364, %s349
        $region44: #{tpu_custom_call.1} parent=31 // pred_fallthru
          _
      $region32: #{tpu_custom_call.1} parent=5 // pred_fallthru
        _
      %p367 = scmp.le.s32.totalorder 2, %s12
      // Predicated region
      $region45: #{tpu_custom_call.1} parent=5 // pred_check
        %p368 = pneg %p367
      $region46: #{tpu_custom_call.1} parent=5 // pred_check_branch
        %370 = sbr.rel (%p368) target = $region48
      $region47: #{tpu_custom_call.1} parent=5 // pred_region
        %s371 = ssub.s32 %s12, 2
        // Predicated region
        $region49: #{tpu_custom_call.1} parent=47 // pred_check
          %p372 = pneg %p131
        $region50: #{tpu_custom_call.1} parent=47 // pred_check_branch
          %374 = sbr.rel (%p372) target = $region52
        $region51: #{tpu_custom_call.1} parent=47 // pred_region
          %s375 = sand.u32 %s116, 1
          %s376 = scalar_lea.sflag [#allocation4], %s375
          %s377 = sand.u32 %s116, 1
          %s378 = smul.addr %s377, 8
          %s379 = scalar_lea.vmem [#allocation3], %s378
          %381 = dma.done %s376, 128
        $region52: #{tpu_custom_call.1} parent=47 // pred_fallthru
          _
      $region48: #{tpu_custom_call.1} parent=5 // pred_fallthru
        _
    $region6: #{tpu_custom_call.1} parent=1 // loop_footer
      %s16 = sadd.s32 1, %s12
    $region7: #{tpu_custom_call.1} parent=1 // loop_footer_branch
      %11 = sbr.rel target = $region3
    $region8: #{tpu_custom_call.1} parent=1 // loop_exit
      _
    %382 = vsyncpa [#allocation4], 1
    %s383 = scalar_lea.sflag [#allocation4], 1
    %384 = vsyncpa %s383, 1

</llo_original>
